<compile_context>
chip_gen: v7x
topology: tpu7x:2x2x1
jax: 0.10.0
libtpu: 0.0.40
codegen_flags: <defaults>
</compile_context>

<pallas_src>
import functools

import jax
import jax.numpy as jnp
from jax.experimental import pallas as pl
from jax.experimental.pallas import tpu as pltpu


def _round_up(n, m):
    return ((n + m - 1) // m) * m


def _resnet_kernel(depth, x_ref, w_in_ref, b_in_ref, w_mid_ref, b_mid_ref,
                   w_out_ref, out_ref):
    """One batch tile: x_ref (d, TN) f32 -> out_ref (dd, TN) f32."""

    def mm(w, a):  # w: (out, in) bf16, a: (in, TN) f32  ->  (out, TN) f32 (MXU, f32 acc)
        return jnp.dot(w, a.astype(jnp.bfloat16), preferred_element_type=jnp.float32)

    x = x_ref[...]                                                   # (d, TN) f32
    h = jnp.maximum(mm(w_in_ref[...], x) + b_in_ref[...], 0.0)       # (width, TN)
    # depth is static & small -> fully unrolled (switch to lax.fori_loop for large depth).
    for i in range(depth):
        h = h + jnp.maximum(mm(w_mid_ref[i], h) + b_mid_ref[i], 0.0)
    out_ref[...] = mm(w_out_ref[...], h).astype(out_ref.dtype)       # linearOut, no bias


def _vmem_bytes(d, dd, width, depth, tile_n):
    wb = 2 * (width * d + depth * width * width + dd * width)        # bf16 weights
    bb = 4 * (width + depth * width)                                 # f32 biases
    io = 2 * 4 * tile_n * (max(d, 8) + max(dd, 8))                   # double-buffered x/out tiles
    act = 6 * 4 * width * tile_n                                     # live activation slabs
    return 2 * (wb + bb) + io + act


def resnet_forward(x, params, depth, *, tile_n=256):
    """x: (N, d) f32. Returns (N, dd) f32."""
    N, d = x.shape
    width = params["w_in"].shape[0]
    dd = params["w_out"].shape[0]

    tile_n = min(tile_n, _round_up(N, 128))
    n_pad = _round_up(N, tile_n)
    grid = (n_pad // tile_n,)

    # Layout plumbing in the wrapper: batch onto the lane axis, zero-pad to tile.
    xT = jnp.zeros((d, n_pad), jnp.float32).at[:, :N].set(x.T)

    vmem_limit = int(min(max(4 * _vmem_bytes(d, dd, width, depth, tile_n), 16 << 20),
                         64 << 20))

    outT = pl.pallas_call(
        functools.partial(_resnet_kernel, depth),
        out_shape=jax.ShapeDtypeStruct((dd, n_pad), jnp.float32),
        grid=grid,
        in_specs=[
            pl.BlockSpec((d, tile_n), lambda i: (0, i)),              # x tile (pipelined)
            pl.BlockSpec((width, d), lambda i: (0, 0)),               # weights: constant index
            pl.BlockSpec((width, 1), lambda i: (0, 0)),               #  -> VMEM-resident,
            pl.BlockSpec((depth, width, width), lambda i: (0, 0, 0)), #     no re-DMA per tile
            pl.BlockSpec((depth, width, 1), lambda i: (0, 0, 0)),
            pl.BlockSpec((dd, width), lambda i: (0, 0)),
        ],
        out_specs=pl.BlockSpec((dd, tile_n), lambda i: (0, i)),       # lane-dense output
        compiler_params=pltpu.CompilerParams(
            dimension_semantics=("parallel",),   # v7x: shard batch tiles across both TCs
            vmem_limit_bytes=vmem_limit,
        ),
    )(xT, params["w_in"], params["b_in"], params["w_mid"], params["b_mid"],
      params["w_out"])

    return outT[:, :N].T


def init_params(key, d, dd, width, depth):
    """Deterministic synthetic parameters (PyTorch (out, in) weight layout)."""
    ks = jax.random.split(key, 5)
    f = lambda k, shp: 0.1 * jax.random.normal(k, shp, jnp.float32)
    return {
        "w_in":  f(ks[0], (width, d)).astype(jnp.bfloat16),
        "b_in":  f(ks[1], (width, 1)),
        "w_mid": f(ks[2], (depth, width, width)).astype(jnp.bfloat16),
        "b_mid": f(ks[3], (depth, width, 1)),
        "w_out": f(ks[4], (dd, width)).astype(jnp.bfloat16),          # out_bias=False
    }


def resnet_ref(x, p, depth):
    """Pure-JAX reference mirroring the PyTorch forward (and the kernel's bf16 matmuls)."""
    def mm(w, a):
        return jnp.dot(w, a.astype(jnp.bfloat16), preferred_element_type=jnp.float32)

    h = jnp.maximum(mm(p["w_in"], x.T) + p["b_in"], 0.0)
    for i in range(depth):
        h = h + jnp.maximum(mm(p["w_mid"][i], h) + p["b_mid"][i], 0.0)
    return mm(p["w_out"], h).T


if __name__ == "__main__":
    # TODO(synk): nn.Dropout path not implemented (module default dropout=False / eval mode).
    d, dd, width, depth = 8, 8, 32, 3
    N = 512                                   # 2 grid tiles of 256 -> pipelined + parallel

    key = jax.random.PRNGKey(0)
    kx, kp = jax.random.split(key)
    x = jax.random.normal(kx, (N, d), jnp.float32)
    params = init_params(kp, d, dd, width, depth)

    out = jax.block_until_ready(resnet_forward(x, params, depth))
    ref = resnet_ref(x, params, depth)

    assert out.shape == (N, dd)
    assert jnp.allclose(out, ref, atol=1e-3, rtol=1e-3), "mismatch vs JAX reference"

    print("KERNEL_OK")
</pallas_src>

<mosaic_0001>
module attributes {stable_mosaic.version = 11 : i64} {
  func.func @_resnet_kernel(%arg0: i32, %arg1: memref<8x256xf32, #tpu.memory_space<vmem>>, %arg2: memref<32x8xbf16, #tpu.memory_space<vmem>>, %arg3: memref<32x1xf32, #tpu.memory_space<vmem>>, %arg4: memref<3x32x32xbf16, #tpu.memory_space<vmem>>, %arg5: memref<3x32x1xf32, #tpu.memory_space<vmem>>, %arg6: memref<8x32xbf16, #tpu.memory_space<vmem>>, %arg7: memref<8x256xf32, #tpu.memory_space<vmem>>) attributes {dimension_semantics = [#tpu.dimension_semantics<parallel>], iteration_bounds = array<i64: 2>, scalar_prefetch = 0 : i64, scratch_operands = 0 : i64, tpu.core_type = #tpu.core_type<tc>, window_params = [{transform_indices = @transform_0, window_bounds = array<i64: 8, 256>}, {pipeline_mode = #tpu.pipeline_mode<synchronous>, transform_indices = @transform_1, window_bounds = array<i64: 32, 8>}, {pipeline_mode = #tpu.pipeline_mode<synchronous>, transform_indices = @transform_2, window_bounds = array<i64: 32, 1>}, {pipeline_mode = #tpu.pipeline_mode<synchronous>, transform_indices = @transform_3, window_bounds = array<i64: 3, 32, 32>}, {pipeline_mode = #tpu.pipeline_mode<synchronous>, transform_indices = @transform_4, window_bounds = array<i64: 3, 32, 1>}, {pipeline_mode = #tpu.pipeline_mode<synchronous>, transform_indices = @transform_5, window_bounds = array<i64: 8, 32>}, {transform_indices = @transform_6, window_bounds = array<i64: 8, 256>}]} {
    %c0 = arith.constant 0 : index
    %c0_0 = arith.constant 0 : index
    %0 = vector.load %arg1[%c0, %c0_0] : memref<8x256xf32, #tpu.memory_space<vmem>>, vector<8x256xf32>
    %c0_1 = arith.constant 0 : index
    %c0_2 = arith.constant 0 : index
    %1 = vector.load %arg2[%c0_1, %c0_2] : memref<32x8xbf16, #tpu.memory_space<vmem>>, vector<32x8xbf16>
    %2 = arith.truncf %0 : vector<8x256xf32> to vector<8x256xbf16>
    %cst = arith.constant dense<0.000000e+00> : vector<32x256xf32>
    %3 = tpu.matmul %1, %2, %cst {dimension_numbers = #tpu.dot_dimension_numbers<[1], [0], [0], [1], [0, 0, 1, 1], [], []>} : vector<32x8xbf16>, vector<8x256xbf16>, vector<32x256xf32> -> vector<32x256xf32>
    %c0_3 = arith.constant 0 : index
    %c0_4 = arith.constant 0 : index
    %4 = vector.load %arg3[%c0_3, %c0_4] : memref<32x1xf32, #tpu.memory_space<vmem>>, vector<32x1xf32>
    %5 = vector.broadcast %4 : vector<32x1xf32> to vector<32x256xf32>
    %6 = arith.addf %3, %5 : vector<32x256xf32>
    %cst_5 = arith.constant 0.000000e+00 : f32
    %7 = vector.broadcast %cst_5 : f32 to vector<32x256xf32>
    %8 = arith.maximumf %6, %7 : vector<32x256xf32>
    %c0_6 = arith.constant 0 : index
    %c0_7 = arith.constant 0 : index
    %c0_8 = arith.constant 0 : index
    %9 = vector.load %arg4[%c0_6, %c0_7, %c0_8] : memref<3x32x32xbf16, #tpu.memory_space<vmem>>, vector<1x32x32xbf16>
    %10 = vector.shape_cast %9 : vector<1x32x32xbf16> to vector<32x32xbf16>
    %11 = arith.truncf %8 : vector<32x256xf32> to vector<32x256xbf16>
    %cst_9 = arith.constant dense<0.000000e+00> : vector<32x256xf32>
    %12 = tpu.matmul %10, %11, %cst_9 {dimension_numbers = #tpu.dot_dimension_numbers<[1], [0], [0], [1], [0, 0, 1, 1], [], []>} : vector<32x32xbf16>, vector<32x256xbf16>, vector<32x256xf32> -> vector<32x256xf32>
    %c0_10 = arith.constant 0 : index
    %c0_11 = arith.constant 0 : index
    %c0_12 = arith.constant 0 : index
    %13 = vector.load %arg5[%c0_10, %c0_11, %c0_12] : memref<3x32x1xf32, #tpu.memory_space<vmem>>, vector<1x32x1xf32>
    %14 = vector.shape_cast %13 : vector<1x32x1xf32> to vector<32x1xf32>
    %15 = vector.broadcast %14 : vector<32x1xf32> to vector<32x256xf32>
    %16 = arith.addf %12, %15 : vector<32x256xf32>
    %cst_13 = arith.constant 0.000000e+00 : f32
    %17 = vector.broadcast %cst_13 : f32 to vector<32x256xf32>
    %18 = arith.maximumf %16, %17 : vector<32x256xf32>
    %19 = arith.addf %8, %18 : vector<32x256xf32>
    %c1 = arith.constant 1 : index
    %c0_14 = arith.constant 0 : index
    %c0_15 = arith.constant 0 : index
    %20 = vector.load %arg4[%c1, %c0_14, %c0_15] : memref<3x32x32xbf16, #tpu.memory_space<vmem>>, vector<1x32x32xbf16>
    %21 = vector.shape_cast %20 : vector<1x32x32xbf16> to vector<32x32xbf16>
    %22 = arith.truncf %19 : vector<32x256xf32> to vector<32x256xbf16>
    %cst_16 = arith.constant dense<0.000000e+00> : vector<32x256xf32>
    %23 = tpu.matmul %21, %22, %cst_16 {dimension_numbers = #tpu.dot_dimension_numbers<[1], [0], [0], [1], [0, 0, 1, 1], [], []>} : vector<32x32xbf16>, vector<32x256xbf16>, vector<32x256xf32> -> vector<32x256xf32>
    %c1_17 = arith.constant 1 : index
    %c0_18 = arith.constant 0 : index
    %c0_19 = arith.constant 0 : index
    %24 = vector.load %arg5[%c1_17, %c0_18, %c0_19] : memref<3x32x1xf32, #tpu.memory_space<vmem>>, vector<1x32x1xf32>
    %25 = vector.shape_cast %24 : vector<1x32x1xf32> to vector<32x1xf32>
    %26 = vector.broadcast %25 : vector<32x1xf32> to vector<32x256xf32>
    %27 = arith.addf %23, %26 : vector<32x256xf32>
    %cst_20 = arith.constant 0.000000e+00 : f32
    %28 = vector.broadcast %cst_20 : f32 to vector<32x256xf32>
    %29 = arith.maximumf %27, %28 : vector<32x256xf32>
    %30 = arith.addf %19, %29 : vector<32x256xf32>
    %c2 = arith.constant 2 : index
    %c0_21 = arith.constant 0 : index
    %c0_22 = arith.constant 0 : index
    %31 = vector.load %arg4[%c2, %c0_21, %c0_22] : memref<3x32x32xbf16, #tpu.memory_space<vmem>>, vector<1x32x32xbf16>
    %32 = vector.shape_cast %31 : vector<1x32x32xbf16> to vector<32x32xbf16>
    %33 = arith.truncf %30 : vector<32x256xf32> to vector<32x256xbf16>
    %cst_23 = arith.constant dense<0.000000e+00> : vector<32x256xf32>
    %34 = tpu.matmul %32, %33, %cst_23 {dimension_numbers = #tpu.dot_dimension_numbers<[1], [0], [0], [1], [0, 0, 1, 1], [], []>} : vector<32x32xbf16>, vector<32x256xbf16>, vector<32x256xf32> -> vector<32x256xf32>
    %c2_24 = arith.constant 2 : index
    %c0_25 = arith.constant 0 : index
    %c0_26 = arith.constant 0 : index
    %35 = vector.load %arg5[%c2_24, %c0_25, %c0_26] : memref<3x32x1xf32, #tpu.memory_space<vmem>>, vector<1x32x1xf32>
    %36 = vector.shape_cast %35 : vector<1x32x1xf32> to vector<32x1xf32>
    %37 = vector.broadcast %36 : vector<32x1xf32> to vector<32x256xf32>
    %38 = arith.addf %34, %37 : vector<32x256xf32>
    %cst_27 = arith.constant 0.000000e+00 : f32
    %39 = vector.broadcast %cst_27 : f32 to vector<32x256xf32>
    %40 = arith.maximumf %38, %39 : vector<32x256xf32>
    %41 = arith.addf %30, %40 : vector<32x256xf32>
    %c0_28 = arith.constant 0 : index
    %c0_29 = arith.constant 0 : index
    %42 = vector.load %arg6[%c0_28, %c0_29] : memref<8x32xbf16, #tpu.memory_space<vmem>>, vector<8x32xbf16>
    %43 = arith.truncf %41 : vector<32x256xf32> to vector<32x256xbf16>
    %cst_30 = arith.constant dense<0.000000e+00> : vector<8x256xf32>
    %44 = tpu.matmul %42, %43, %cst_30 {dimension_numbers = #tpu.dot_dimension_numbers<[1], [0], [0], [1], [0, 0, 1, 1], [], []>} : vector<8x32xbf16>, vector<32x256xbf16>, vector<8x256xf32> -> vector<8x256xf32>
    %c0_31 = arith.constant 0 : index
    %c0_32 = arith.constant 0 : index
    %45 = vector.load %arg7[%c0_31, %c0_32] : memref<8x256xf32, #tpu.memory_space<vmem>>, vector<8x256xf32>
    tpu.vector_store %arg7[%c0_31, %c0_32], %44 {strides = array<i32>} : memref<8x256xf32, #tpu.memory_space<vmem>>, vector<8x256xf32>,
    return
  }
  func.func @transform_0(%arg0: i32) -> (i32, i32) {
    %c0_i32 = arith.constant 0 : i32
    %c0_i32_0 = arith.constant 0 : i32
    return %c0_i32, %arg0 : i32, i32
  }
  func.func @transform_1(%arg0: i32) -> (i32, i32) {
    %c0_i32 = arith.constant 0 : i32
    %c0_i32_0 = arith.constant 0 : i32
    %c0_i32_1 = arith.constant 0 : i32
    return %c0_i32, %c0_i32_0 : i32, i32
  }
  func.func @transform_2(%arg0: i32) -> (i32, i32) {
    %c0_i32 = arith.constant 0 : i32
    %c0_i32_0 = arith.constant 0 : i32
    %c0_i32_1 = arith.constant 0 : i32
    return %c0_i32, %c0_i32_0 : i32, i32
  }
  func.func @transform_3(%arg0: i32) -> (i32, i32, i32) {
    %c0_i32 = arith.constant 0 : i32
    %c0_i32_0 = arith.constant 0 : i32
    %c0_i32_1 = arith.constant 0 : i32
    %c0_i32_2 = arith.constant 0 : i32
    return %c0_i32, %c0_i32_0, %c0_i32_1 : i32, i32, i32
  }
  func.func @transform_4(%arg0: i32) -> (i32, i32, i32) {
    %c0_i32 = arith.constant 0 : i32
    %c0_i32_0 = arith.constant 0 : i32
    %c0_i32_1 = arith.constant 0 : i32
    %c0_i32_2 = arith.constant 0 : i32
    return %c0_i32, %c0_i32_0, %c0_i32_1 : i32, i32, i32
  }
  func.func @transform_5(%arg0: i32) -> (i32, i32) {
    %c0_i32 = arith.constant 0 : i32
    %c0_i32_0 = arith.constant 0 : i32
    %c0_i32_1 = arith.constant 0 : i32
    return %c0_i32, %c0_i32_0 : i32, i32
  }
  func.func @transform_6(%arg0: i32) -> (i32, i32) {
    %c0_i32 = arith.constant 0 : i32
    %c0_i32_0 = arith.constant 0 : i32
    return %c0_i32, %arg0 : i32, i32
  }
}

</mosaic_0001>

<llo_original>
// kernel: tpu_custom_call.1
$region0: #{tpu_custom_call.1}
  #allocation0 [shape = 'u32[]', space=smem, size = 0x4, offset = 0x4, fixed_abs, tag = 'smem constant byte address 0x4 - core index']
  #allocation1 [shape = 'u32[144,128]{1,0:T(1,128)}', space=vmem, size = 0x12000, scoped, tag = 'internal scratch']
  %s0 = inlined_call_operand.vmem [shape: f32[8,512], index: 0, kind: input, shape index: {}]
  %s1 = inlined_call_operand.vmem [shape: bf16[32,8], index: 1, kind: input, shape index: {}]
  %s2 = inlined_call_operand.vmem [shape: f32[32,1], index: 2, kind: input, shape index: {}]
  %s3 = inlined_call_operand.vmem [shape: bf16[3,32,32], index: 3, kind: input, shape index: {}]
  %s4 = inlined_call_operand.vmem [shape: f32[3,32,1], index: 4, kind: input, shape index: {}]
  %s5 = inlined_call_operand.vmem [shape: bf16[8,32], index: 5, kind: input, shape index: {}]
  %s6 = inlined_call_operand.hbm [shape: f32[8,512], index: 6, kind: output, shape index: {}]
  %s7 = sld [smem:[#allocation0]]
  $region57: #{tpu_custom_call.1} parent=0
    _
  %s9 = ssub.s32 1, %s7
  %s10 = scalar_select 0, %s9, %s7
  $region1: #{tpu_custom_call.1} parent=0
    #allocation2 [shape = 'u8[16384]{0}', space=vmem, size = 0x4000, scoped, tag = 'output window, operand 0']
    #allocation3 [shape = 's32[2]{0}', space=sflag, size = 0x8, scoped, tag = 'scoped memory for tpu_custom_call.1']
    %11 = vsyncpa [#allocation3], 0
    %s12 = scalar_lea.sflag [#allocation3], 1
    %13 = vsyncpa %s12, 0
    loop: start=0, step=1, limit=4
    $region2: #{tpu_custom_call.1} parent=1 // loop_pre_header
      _
    $region3: #{tpu_custom_call.1} parent=1 // loop_header
      %s15 = sphi 0, %s19
      %p16 = scmp.ge.s32.totalorder %s15, 4
      %s25 = sphi 0, %s27
      %s28 = sphi 0, %s25
      %s29 = sphi 0, %s28
      %s45 = sphi 0, %s29
      %s49 = sphi 0, %s49
      %s51 = sphi 0, %s49
      %s52 = sphi 0, %s51
      %s66 = sphi 0, %s52
      %s70 = sphi 0, %s70
      %s72 = sphi 0, %s70
      %s73 = sphi 0, %s72
      %s87 = sphi 0, %s73
      %s91 = sphi 0, %s91
      %s93 = sphi 0, %s91
      %s94 = sphi 0, %s93
      %s108 = sphi 0, %s94
      %s112 = sphi 0, %s112
      %s114 = sphi 0, %s112
      %s115 = sphi 0, %s114
      %s129 = sphi 0, %s115
      %s133 = sphi 0, %s133
      %s135 = sphi 0, %s133
      %s136 = sphi 0, %s135
      %s150 = sphi 0, %s136
      %s156 = sphi 0, %s158
      %s159 = sphi 0, %s156
      %s160 = sphi 0, %s159
      %s176 = sphi 0, %s160
    $region4: #{tpu_custom_call.1} parent=1 // loop_header_branch
      %18 = sbr.rel (%p16) target = $region8
    $region5: #{tpu_custom_call.1} parent=1 // loop_body
      %s20 = ssub.s32 %s15, 1
      %s21 = ssub.s32 %s15, 2
      %s22 = sadd.s32 %s15, 1
      %s23 = ssub.s32 %s15, %s22
      %p24 = scmp.eq.s32.totalorder %s23, 0
      %s26 = sadd.s32 %s25, 1
      %s27 = scalar_select %p24, %s25, %s26
      %p30 = pneg %p24
      %p31 = scmp.eq.s32.totalorder %s15, 1
      %p32 = por %p30, %p31
      %p33 = scmp.ne.s32.totalorder %s25, %s28
      %p34 = scmp.eq.s32.totalorder %s15, 0
      %p35 = por %p33, %p34
      %p36 = scmp.ne.s32.totalorder %s25, %s28
      %p37 = scmp.eq.s32.totalorder %s20, 1
      %p38 = por %p36, %p37
      %p39 = scmp.ne.s32.totalorder %s28, %s29
      %p40 = scmp.eq.s32.totalorder %s20, 0
      %p41 = por %p39, %p40
      %p42 = scmp.ne.s32.totalorder %s28, %s29
      %p43 = scmp.eq.s32.totalorder %s21, 1
      %p44 = por %p42, %p43
      %p46 = scmp.ne.s32.totalorder %s29, %s45
      %p47 = scmp.eq.s32.totalorder %s21, 0
      %p48 = por %p46, %p47
      %s50 = sadd.s32 %s49, 1
      %p53 = scmp.eq.s32.totalorder %s15, 1
      %p54 = scmp.ne.s32.totalorder %s49, %s51
      %p55 = scmp.eq.s32.totalorder %s15, 0
      %p56 = por %p54, %p55
      %p57 = scmp.ne.s32.totalorder %s49, %s51
      %p58 = scmp.eq.s32.totalorder %s20, 1
      %p59 = por %p57, %p58
      %p60 = scmp.ne.s32.totalorder %s51, %s52
      %p61 = scmp.eq.s32.totalorder %s20, 0
      %p62 = por %p60, %p61
      %p63 = scmp.ne.s32.totalorder %s51, %s52
      %p64 = scmp.eq.s32.totalorder %s21, 1
      %p65 = por %p63, %p64
      %p67 = scmp.ne.s32.totalorder %s52, %s66
      %p68 = scmp.eq.s32.totalorder %s21, 0
      %p69 = por %p67, %p68
      %s71 = sadd.s32 %s70, 1
      %p74 = scmp.eq.s32.totalorder %s15, 1
      %p75 = scmp.ne.s32.totalorder %s70, %s72
      %p76 = scmp.eq.s32.totalorder %s15, 0
      %p77 = por %p75, %p76
      %p78 = scmp.ne.s32.totalorder %s70, %s72
      %p79 = scmp.eq.s32.totalorder %s20, 1
      %p80 = por %p78, %p79
      %p81 = scmp.ne.s32.totalorder %s72, %s73
      %p82 = scmp.eq.s32.totalorder %s20, 0
      %p83 = por %p81, %p82
      %p84 = scmp.ne.s32.totalorder %s72, %s73
      %p85 = scmp.eq.s32.totalorder %s21, 1
      %p86 = por %p84, %p85
      %p88 = scmp.ne.s32.totalorder %s73, %s87
      %p89 = scmp.eq.s32.totalorder %s21, 0
      %p90 = por %p88, %p89
      %s92 = sadd.s32 %s91, 1
      %p95 = scmp.eq.s32.totalorder %s15, 1
      %p96 = scmp.ne.s32.totalorder %s91, %s93
      %p97 = scmp.eq.s32.totalorder %s15, 0
      %p98 = por %p96, %p97
      %p99 = scmp.ne.s32.totalorder %s91, %s93
      %p100 = scmp.eq.s32.totalorder %s20, 1
      %p101 = por %p99, %p100
      %p102 = scmp.ne.s32.totalorder %s93, %s94
      %p103 = scmp.eq.s32.totalorder %s20, 0
      %p104 = por %p102, %p103
      %p105 = scmp.ne.s32.totalorder %s93, %s94
      %p106 = scmp.eq.s32.totalorder %s21, 1
      %p107 = por %p105, %p106
      %p109 = scmp.ne.s32.totalorder %s94, %s108
      %p110 = scmp.eq.s32.totalorder %s21, 0
      %p111 = por %p109, %p110
      %s113 = sadd.s32 %s112, 1
      %p116 = scmp.eq.s32.totalorder %s15, 1
      %p117 = scmp.ne.s32.totalorder %s112, %s114
      %p118 = scmp.eq.s32.totalorder %s15, 0
      %p119 = por %p117, %p118
      %p120 = scmp.ne.s32.totalorder %s112, %s114
      %p121 = scmp.eq.s32.totalorder %s20, 1
      %p122 = por %p120, %p121
      %p123 = scmp.ne.s32.totalorder %s114, %s115
      %p124 = scmp.eq.s32.totalorder %s20, 0
      %p125 = por %p123, %p124
      %p126 = scmp.ne.s32.totalorder %s114, %s115
      %p127 = scmp.eq.s32.totalorder %s21, 1
      %p128 = por %p126, %p127
      %p130 = scmp.ne.s32.totalorder %s115, %s129
      %p131 = scmp.eq.s32.totalorder %s21, 0
      %p132 = por %p130, %p131
      %s134 = sadd.s32 %s133, 1
      %p137 = scmp.eq.s32.totalorder %s15, 1
      %p138 = scmp.ne.s32.totalorder %s133, %s135
      %p139 = scmp.eq.s32.totalorder %s15, 0
      %p140 = por %p138, %p139
      %p141 = scmp.ne.s32.totalorder %s133, %s135
      %p142 = scmp.eq.s32.totalorder %s20, 1
      %p143 = por %p141, %p142
      %p144 = scmp.ne.s32.totalorder %s135, %s136
      %p145 = scmp.eq.s32.totalorder %s20, 0
      %p146 = por %p144, %p145
      %p147 = scmp.ne.s32.totalorder %s135, %s136
      %p148 = scmp.eq.s32.totalorder %s21, 1
      %p149 = por %p147, %p148
      %p151 = scmp.ne.s32.totalorder %s136, %s150
      %p152 = scmp.eq.s32.totalorder %s21, 0
      %p153 = por %p151, %p152
      %s154 = ssub.s32 %s15, %s22
      %p155 = scmp.eq.s32.totalorder %s154, 0
      %s157 = sadd.s32 %s156, 1
      %s158 = scalar_select %p155, %s156, %s157
      %p161 = pneg %p155
      %p162 = scmp.eq.s32.totalorder %s15, 1
      %p163 = por %p161, %p162
      %p164 = scmp.ne.s32.totalorder %s156, %s159
      %p165 = scmp.eq.s32.totalorder %s15, 0
      %p166 = por %p164, %p165
      %p167 = scmp.ne.s32.totalorder %s156, %s159
      %p168 = scmp.eq.s32.totalorder %s20, 1
      %p169 = por %p167, %p168
      %p170 = scmp.ne.s32.totalorder %s159, %s160
      %p171 = scmp.eq.s32.totalorder %s20, 0
      %p172 = por %p170, %p171
      %p173 = scmp.ne.s32.totalorder %s159, %s160
      %p174 = scmp.eq.s32.totalorder %s21, 1
      %p175 = por %p173, %p174
      %p177 = scmp.ne.s32.totalorder %s160, %s176
      %p178 = scmp.eq.s32.totalorder %s21, 0
      %p179 = por %p177, %p178
      %p180 = scmp.le.s32.totalorder 1, %s15
      %p181 = scmp.lt.s32.totalorder %s15, 3
      %p182 = pnand %p180, %p181
      %p183 = pneg %p182
      // Predicated region
      $region9: #{tpu_custom_call.1} parent=5 // pred_check
        _
      $region10: #{tpu_custom_call.1} parent=5 // pred_check_branch
        %185 = sbr.rel (%p182) target = $region12
      $region11: #{tpu_custom_call.1} parent=5 // pred_region
        %s186 = ssub.s32 %s15, 1
        // Predicated region
        $region13: #{tpu_custom_call.1} parent=11 // pred_check
          %p187 = pneg %p62
        $region14: #{tpu_custom_call.1} parent=11 // pred_check_branch
          %189 = sbr.rel (%p187) target = $region16
        $region15: #{tpu_custom_call.1} parent=11 // pred_region
          _
        $region16: #{tpu_custom_call.1} parent=11 // pred_fallthru
          _
        // Predicated region
        $region17: #{tpu_custom_call.1} parent=11 // pred_check
          %p190 = pneg %p83
        $region18: #{tpu_custom_call.1} parent=11 // pred_check_branch
          %192 = sbr.rel (%p190) target = $region20
        $region19: #{tpu_custom_call.1} parent=11 // pred_region
          _
        $region20: #{tpu_custom_call.1} parent=11 // pred_fallthru
          _
        // Predicated region
        $region21: #{tpu_custom_call.1} parent=11 // pred_check
          %p193 = pneg %p104
        $region22: #{tpu_custom_call.1} parent=11 // pred_check_branch
          %195 = sbr.rel (%p193) target = $region24
        $region23: #{tpu_custom_call.1} parent=11 // pred_region
          _
        $region24: #{tpu_custom_call.1} parent=11 // pred_fallthru
          _
        // Predicated region
        $region25: #{tpu_custom_call.1} parent=11 // pred_check
          %p196 = pneg %p125
        $region26: #{tpu_custom_call.1} parent=11 // pred_check_branch
          %198 = sbr.rel (%p196) target = $region28
        $region27: #{tpu_custom_call.1} parent=11 // pred_region
          _
        $region28: #{tpu_custom_call.1} parent=11 // pred_fallthru
          _
        // Predicated region
        $region29: #{tpu_custom_call.1} parent=11 // pred_check
          %p199 = pneg %p146
        $region30: #{tpu_custom_call.1} parent=11 // pred_check_branch
          %201 = sbr.rel (%p199) target = $region32
        $region31: #{tpu_custom_call.1} parent=11 // pred_region
          _
        $region32: #{tpu_custom_call.1} parent=11 // pred_fallthru
          _
      $region12: #{tpu_custom_call.1} parent=5 // pred_fallthru
        _
      %p202 = scmp.lt.s32.totalorder %s15, 2
      // Predicated region
      $region33: #{tpu_custom_call.1} parent=5 // pred_check
        %p203 = pneg %p202
      $region34: #{tpu_custom_call.1} parent=5 // pred_check_branch
        %205 = sbr.rel (%p203) target = $region36
      $region35: #{tpu_custom_call.1} parent=5 // pred_region
        // Predicated region
        $region37: #{tpu_custom_call.1} parent=35 // pred_check
          %p206 = pneg %p35
        $region38: #{tpu_custom_call.1} parent=35 // pred_check_branch
          %208 = sbr.rel (%p206) target = $region40
        $region39: #{tpu_custom_call.1} parent=35 // pred_region
          %s209 = smul.u32 2, %s15
          %p210 = scmp.lt.s32.totalorder %s209, 3
          %s211 = scalar_select %p210, %s209, 3
          %s212 = smul.addr %s211, 8
          %s213 = scalar_lea.vmem %s0, %s212
          %s214 = smul.u32 2, %s15
        $region40: #{tpu_custom_call.1} parent=35 // pred_fallthru
          _
      $region36: #{tpu_custom_call.1} parent=5 // pred_fallthru
        _
      %p215 = scmp.le.s32.totalorder 1, %s15
      %p216 = scmp.lt.s32.totalorder %s15, 3
      %p217 = pnand %p215, %p216
      %p218 = pneg %p217
      // Predicated region
      $region41: #{tpu_custom_call.1} parent=5 // pred_check
        _
      $region42: #{tpu_custom_call.1} parent=5 // pred_check_branch
        %220 = sbr.rel (%p217) target = $region44
      $region43: #{tpu_custom_call.1} parent=5 // pred_region
        %s221 = ssub.s32 %s15, 1
        %s222 = smul.u32 2, %s20
        %p223 = scmp.lt.s32.totalorder %s222, 3
        %s224 = scalar_select %p223, %s222, 3
        %s225 = smul.addr %s224, 8
        %s226 = scalar_lea.vmem %s0, %s225
        %p227 = pneg %p41
        %p228 = pneg %p38
        %p229 = pneg %p62
        %p230 = pneg %p59
        %p231 = pneg %p83
        %p232 = pneg %p80
        %p233 = pneg %p104
        %p234 = pneg %p101
        %p235 = pneg %p125
        %p236 = pneg %p122
        %p237 = pneg %p146
        %p238 = pneg %p143
        %p239 = pneg %p172
        %p240 = pneg %p169
        %s241 = sand.u32 %s159, 1
        %s242 = scalar_lea.sflag [#allocation3], %s241
        %s243 = sand.u32 %s159, 1
        %s244 = smul.addr %s243, 16
        %s245 = scalar_lea.vmem [#allocation2], %s244
        %s246 = smul.u32 2, %s20
        %p247 = scmp.lt.s32.totalorder %s246, 3
        %s248 = scalar_select %p247, %s246, 3
        %s249 = smul.addr %s248, 8
        %s250 = scalar_lea.vmem %s0, %s249
        %s251 = smul.u32 2, %s20
        %s252 = smul.u32 2, %s20
        %v254 = vld [vmem:[%s250] sm:$0xff]
        %v255 = vld [vmem:[%s250 + $0x8] sm:$0xff]
        %v256 = vld [vmem:[%s1] sm:$0xf]
        %v257 = vld [vmem:[%s1 + $0x4] sm:$0xf]
        %v258 = vld [vmem:[%s1 + $0x8] sm:$0xf]
        %v259 = vld [vmem:[%s1 + $0xc] sm:$0xf]
        %v260 = vpack.c.bf16 %v254, %v254
        %v261 = vpack.c.bf16 %v255, %v255
        %v262 = vld [vmem:[%s2] sm:$0xff]
        %v263 = vld [vmem:[%s2 + $0x8] sm:$0xff]
        %v264 = vld [vmem:[%s2 + $0x10] sm:$0xff]
        %v265 = vld [vmem:[%s2 + $0x18] sm:$0xff]
        %267 = vset.pattern.permute.xlu0 0
        %268 = vperm.xlu0 %267, %v262
        %v269 = vpop.permute.xlu0 %268
        %272 = vset.pattern.permute.xlu0 0
        %273 = vperm.xlu0 %272, %v263
        %v274 = vpop.permute.xlu0 %273
        %277 = vset.pattern.permute.xlu0 0
        %278 = vperm.xlu0 %277, %v264
        %v279 = vpop.permute.xlu0 %278
        %282 = vset.pattern.permute.xlu0 0
        %283 = vperm.xlu0 %282, %v265
        %v284 = vpop.permute.xlu0 %283
        %v290 = vunpack.c.l.b16 %v256
        %v291 = vunpack.c.l.b16 %v257
        %v292 = vunpack.c.l.b16 %v258
        %v293 = vunpack.c.l.b16 %v259
        %v294 = vpack.c.b16 %v291, %v290
        %v295 = vpack.c.b16 %v293, %v292
        %vm296 = vcmask 64512
        %v298 = vsel %vm296, %v294, 0
        %v301 = vsel %vm296, %v295, 0
        %vm303 = vcmask 1043456
        %v305 = vsel %vm303, %v260, 0
        %v308 = vsel %vm303, %v261, 0
        %310 = vmatprep.subr.bf16.mxu0 %v308
        %311 = vmatpush1.bf16.msra.mxu0 %v305
        %312 = vmatprep.subr.bf16.mxu0 0
        %313 = vmatpush1.bf16.msra.mxu0 0
        %314 = vmatprep.subr.bf16.mxu0 0
        %315 = vmatpush1.bf16.msra.mxu0 0
        %316 = vmatprep.subr.bf16.mxu0 0
        %317 = vmatpush1.bf16.msra.mxu0 0
        %318 = vmatprep.subr.bf16.mxu0 0
        %319 = vmatpush1.bf16.msra.mxu0 0
        %320 = vmatprep.subr.bf16.mxu0 0
        %321 = vmatpush1.bf16.msra.mxu0 0
        %322 = vmatprep.subr.bf16.mxu0 0
        %323 = vmatpush1.bf16.msra.mxu0 0
        %324 = vmatprep.subr.bf16.mxu0 0
        %325 = vmatpush1.bf16.msra.mxu0 0
        %326 = vmatprep.subr.bf16.mxu0 0
        %327 = vmatpush1.bf16.msra.mxu0 0
        %328 = vmatprep.subr.bf16.mxu0 0
        %329 = vmatpush1.bf16.msra.mxu0 0
        %330 = vmatprep.subr.bf16.mxu0 0
        %331 = vmatpush1.bf16.msra.mxu0 0
        %332 = vmatprep.subr.bf16.mxu0 0
        %333 = vmatpush1.bf16.msra.mxu0 0
        %334 = vmatprep.subr.bf16.mxu0 0
        %335 = vmatpush1.bf16.msra.mxu0 0
        %336 = vmatprep.subr.bf16.mxu0 0
        %337 = vmatpush1.bf16.msra.mxu0 0
        %338 = vmatprep.subr.bf16.mxu0 0
        %339 = vmatpush1.bf16.msra.mxu0 0
        %340 = vmatprep.subr.bf16.mxu0 0
        %341 = vmatpush1.bf16.msra.mxu0 0
        %342 = vmatprep.mubr.bf16.mxu0 0
        %343 = vmatmul.mubr.bf16.gmra.mrb[0].mxu0 %v298
        %v344 = vpop.f32.mrb[0].mxu0
        %v345 = vadd.f32 %v269, %v344
        %v346 = vpop.f32.mrb[0].mxu0
        %v347 = vadd.f32 %v269, %v346
        %v348 = vpop.f32.mrb[0].mxu0
        %v349 = vadd.f32 %v274, %v348
        %v350 = vpop.f32.mrb[0].mxu0
        %v351 = vadd.f32 %v274, %v350
        %352 = vmatprep.mubr.bf16.mxu0 0
        %353 = vmatmul.mubr.bf16.gmra.mrb[0].mxu0 %v301
        %v354 = vpop.f32.mrb[0].mxu0
        %v355 = vadd.f32 %v279, %v354
        %v356 = vpop.f32.mrb[0].mxu0
        %v357 = vadd.f32 %v279, %v356
        %v358 = vpop.f32.mrb[0].mxu0
        %v359 = vadd.f32 %v284, %v358
        %v360 = vpop.f32.mrb[0].mxu0
        %v361 = vadd.f32 %v284, %v360
        %362 = vdwg.mxu0
        %v363 = vmax.f32 %v345, 0.0
        %v364 = vmax.f32 %v347, 0.0
        %v365 = vmax.f32 %v349, 0.0
        %v366 = vmax.f32 %v351, 0.0
        %v367 = vmax.f32 %v355, 0.0
        %v368 = vmax.f32 %v357, 0.0
        %v369 = vmax.f32 %v359, 0.0
        %v370 = vmax.f32 %v361, 0.0
        %v371 = vld [vmem:[%s3] sm:$0xf]
        %v372 = vld [vmem:[%s3 + $0x4] sm:$0xf]
        %v373 = vld [vmem:[%s3 + $0x8] sm:$0xf]
        %v374 = vld [vmem:[%s3 + $0xc] sm:$0xf]
        %v375 = vpack.c.bf16 %v365, %v363
        %v376 = vpack.c.bf16 %v366, %v364
        %v377 = vpack.c.bf16 %v369, %v367
        %v378 = vpack.c.bf16 %v370, %v368
        %v379 = vld [vmem:[%s4] sm:$0xff]
        %v380 = vld [vmem:[%s4 + $0x8] sm:$0xff]
        %v381 = vld [vmem:[%s4 + $0x10] sm:$0xff]
        %v382 = vld [vmem:[%s4 + $0x18] sm:$0xff]
        %384 = vset.pattern.permute.xlu0 0
        %385 = vperm.xlu0 %384, %v379
        %v386 = vpop.permute.xlu0 %385
        %389 = vset.pattern.permute.xlu0 0
        %390 = vperm.xlu0 %389, %v380
        %v391 = vpop.permute.xlu0 %390
        %394 = vset.pattern.permute.xlu0 0
        %395 = vperm.xlu0 %394, %v381
        %v396 = vpop.permute.xlu0 %395
        %399 = vset.pattern.permute.xlu0 0
        %400 = vperm.xlu0 %399, %v382
        %v401 = vpop.permute.xlu0 %400
        %v407 = vunpack.c.l.b16 %v371
        %v408 = vunpack.c.l.b16 %v372
        %v409 = vunpack.c.l.b16 %v373
        %v410 = vunpack.c.l.b16 %v374
        %v411 = vpack.c.b16 %v408, %v407
        %v412 = vpack.c.b16 %v410, %v409
        %vm413 = vcmask 261120
        %v415 = vsel %vm413, %v411, 0
        %v418 = vsel %vm413, %v412, 0
        %420 = vmatprep.subr.bf16.mxu0 %v376
        %421 = vmatpush1.bf16.msra.mxu0 %v375
        %422 = vmatprep.subr.bf16.mxu0 %v378
        %423 = vmatpush1.bf16.msra.mxu0 %v377
        %424 = vmatprep.subr.bf16.mxu0 0
        %425 = vmatpush1.bf16.msra.mxu0 0
        %426 = vmatprep.subr.bf16.mxu0 0
        %427 = vmatpush1.bf16.msra.mxu0 0
        %428 = vmatprep.subr.bf16.mxu0 0
        %429 = vmatpush1.bf16.msra.mxu0 0
        %430 = vmatprep.subr.bf16.mxu0 0
        %431 = vmatpush1.bf16.msra.mxu0 0
        %432 = vmatprep.subr.bf16.mxu0 0
        %433 = vmatpush1.bf16.msra.mxu0 0
        %434 = vmatprep.subr.bf16.mxu0 0
        %435 = vmatpush1.bf16.msra.mxu0 0
        %436 = vmatprep.subr.bf16.mxu0 0
        %437 = vmatpush1.bf16.msra.mxu0 0
        %438 = vmatprep.subr.bf16.mxu0 0
        %439 = vmatpush1.bf16.msra.mxu0 0
        %440 = vmatprep.subr.bf16.mxu0 0
        %441 = vmatpush1.bf16.msra.mxu0 0
        %442 = vmatprep.subr.bf16.mxu0 0
        %443 = vmatpush1.bf16.msra.mxu0 0
        %444 = vmatprep.subr.bf16.mxu0 0
        %445 = vmatpush1.bf16.msra.mxu0 0
        %446 = vmatprep.subr.bf16.mxu0 0
        %447 = vmatpush1.bf16.msra.mxu0 0
        %448 = vmatprep.subr.bf16.mxu0 0
        %449 = vmatpush1.bf16.msra.mxu0 0
        %450 = vmatprep.subr.bf16.mxu0 0
        %451 = vmatpush1.bf16.msra.mxu0 0
        %452 = vmatprep.mubr.bf16.mxu0 0
        %453 = vmatmul.mubr.bf16.gmra.mrb[0].mxu0 %v415
        %v454 = vpop.f32.mrb[0].mxu0
        %v455 = vadd.f32 %v386, %v454
        %v456 = vpop.f32.mrb[0].mxu0
        %v457 = vadd.f32 %v386, %v456
        %v458 = vpop.f32.mrb[0].mxu0
        %v459 = vadd.f32 %v391, %v458
        %v460 = vpop.f32.mrb[0].mxu0
        %v461 = vadd.f32 %v391, %v460
        %462 = vmatprep.mubr.bf16.mxu0 0
        %463 = vmatmul.mubr.bf16.gmra.mrb[0].mxu0 %v418
        %v464 = vpop.f32.mrb[0].mxu0
        %v465 = vadd.f32 %v396, %v464
        %v466 = vpop.f32.mrb[0].mxu0
        %v467 = vadd.f32 %v396, %v466
        %v468 = vpop.f32.mrb[0].mxu0
        %v469 = vadd.f32 %v401, %v468
        %v470 = vpop.f32.mrb[0].mxu0
        %v471 = vadd.f32 %v401, %v470
        %472 = vdwg.mxu0
        %v473 = vmax.f32 %v455, 0.0
        %v474 = vmax.f32 %v457, 0.0
        %v475 = vmax.f32 %v459, 0.0
        %v476 = vmax.f32 %v461, 0.0
        %v477 = vmax.f32 %v465, 0.0
        %v478 = vmax.f32 %v467, 0.0
        %v479 = vmax.f32 %v469, 0.0
        %v480 = vmax.f32 %v471, 0.0
        %v481 = vadd.f32 %v363, %v473
        %v482 = vadd.f32 %v364, %v474
        %v483 = vadd.f32 %v365, %v475
        %v484 = vadd.f32 %v366, %v476
        %v485 = vadd.f32 %v367, %v477
        %v486 = vadd.f32 %v368, %v478
        %v487 = vadd.f32 %v369, %v479
        %v488 = vadd.f32 %v370, %v480
        %s489 = scalar_lea.vmem %s3, 16
        %v490 = vld [vmem:[%s489] sm:$0xf]
        %v491 = vld [vmem:[%s489 + $0x4] sm:$0xf]
        %v492 = vld [vmem:[%s489 + $0x8] sm:$0xf]
        %v493 = vld [vmem:[%s489 + $0xc] sm:$0xf]
        %v494 = vpack.c.bf16 %v483, %v481
        %v495 = vpack.c.bf16 %v484, %v482
        %v496 = vpack.c.bf16 %v487, %v485
        %v497 = vpack.c.bf16 %v488, %v486
        %s498 = scalar_lea.vmem %s4, 32
        %v499 = vld [vmem:[%s498] sm:$0xff]
        %v500 = vld [vmem:[%s498 + $0x8] sm:$0xff]
        %v501 = vld [vmem:[%s498 + $0x10] sm:$0xff]
        %v502 = vld [vmem:[%s498 + $0x18] sm:$0xff]
        %504 = vset.pattern.permute.xlu0 0
        %505 = vperm.xlu0 %504, %v499
        %v506 = vpop.permute.xlu0 %505
        %509 = vset.pattern.permute.xlu0 0
        %510 = vperm.xlu0 %509, %v500
        %v511 = vpop.permute.xlu0 %510
        %514 = vset.pattern.permute.xlu0 0
        %515 = vperm.xlu0 %514, %v501
        %v516 = vpop.permute.xlu0 %515
        %519 = vset.pattern.permute.xlu0 0
        %520 = vperm.xlu0 %519, %v502
        %v521 = vpop.permute.xlu0 %520
        %v527 = vunpack.c.l.b16 %v490
        %v528 = vunpack.c.l.b16 %v491
        %v529 = vunpack.c.l.b16 %v492
        %v530 = vunpack.c.l.b16 %v493
        %v531 = vpack.c.b16 %v528, %v527
        %v532 = vpack.c.b16 %v530, %v529
        %v534 = vsel %vm413, %v531, 0
        %v537 = vsel %vm413, %v532, 0
        %539 = vmatprep.subr.bf16.mxu0 %v495
        %540 = vmatpush1.bf16.msra.mxu0 %v494
        %541 = vmatprep.subr.bf16.mxu0 %v497
        %542 = vmatpush1.bf16.msra.mxu0 %v496
        %543 = vmatprep.subr.bf16.mxu0 0
        %544 = vmatpush1.bf16.msra.mxu0 0
        %545 = vmatprep.subr.bf16.mxu0 0
        %546 = vmatpush1.bf16.msra.mxu0 0
        %547 = vmatprep.subr.bf16.mxu0 0
        %548 = vmatpush1.bf16.msra.mxu0 0
        %549 = vmatprep.subr.bf16.mxu0 0
        %550 = vmatpush1.bf16.msra.mxu0 0
        %551 = vmatprep.subr.bf16.mxu0 0
        %552 = vmatpush1.bf16.msra.mxu0 0
        %553 = vmatprep.subr.bf16.mxu0 0
        %554 = vmatpush1.bf16.msra.mxu0 0
        %555 = vmatprep.subr.bf16.mxu0 0
        %556 = vmatpush1.bf16.msra.mxu0 0
        %557 = vmatprep.subr.bf16.mxu0 0
        %558 = vmatpush1.bf16.msra.mxu0 0
        %559 = vmatprep.subr.bf16.mxu0 0
        %560 = vmatpush1.bf16.msra.mxu0 0
        %561 = vmatprep.subr.bf16.mxu0 0
        %562 = vmatpush1.bf16.msra.mxu0 0
        %563 = vmatprep.subr.bf16.mxu0 0
        %564 = vmatpush1.bf16.msra.mxu0 0
        %565 = vmatprep.subr.bf16.mxu0 0
        %566 = vmatpush1.bf16.msra.mxu0 0
        %567 = vmatprep.subr.bf16.mxu0 0
        %568 = vmatpush1.bf16.msra.mxu0 0
        %569 = vmatprep.subr.bf16.mxu0 0
        %570 = vmatpush1.bf16.msra.mxu0 0
        %571 = vmatprep.mubr.bf16.mxu0 0
        %572 = vmatmul.mubr.bf16.gmra.mrb[0].mxu0 %v534
        %v573 = vpop.f32.mrb[0].mxu0
        %v574 = vadd.f32 %v506, %v573
        %v575 = vpop.f32.mrb[0].mxu0
        %v576 = vadd.f32 %v506, %v575
        %v577 = vpop.f32.mrb[0].mxu0
        %v578 = vadd.f32 %v511, %v577
        %v579 = vpop.f32.mrb[0].mxu0
        %v580 = vadd.f32 %v511, %v579
        %581 = vmatprep.mubr.bf16.mxu0 0
        %582 = vmatmul.mubr.bf16.gmra.mrb[0].mxu0 %v537
        %v583 = vpop.f32.mrb[0].mxu0
        %v584 = vadd.f32 %v516, %v583
        %v585 = vpop.f32.mrb[0].mxu0
        %v586 = vadd.f32 %v516, %v585
        %v587 = vpop.f32.mrb[0].mxu0
        %v588 = vadd.f32 %v521, %v587
        %v589 = vpop.f32.mrb[0].mxu0
        %v590 = vadd.f32 %v521, %v589
        %591 = vdwg.mxu0
        %v592 = vmax.f32 %v574, 0.0
        %v593 = vmax.f32 %v576, 0.0
        %v594 = vmax.f32 %v578, 0.0
        %v595 = vmax.f32 %v580, 0.0
        %v596 = vmax.f32 %v584, 0.0
        %v597 = vmax.f32 %v586, 0.0
        %v598 = vmax.f32 %v588, 0.0
        %v599 = vmax.f32 %v590, 0.0
        %v600 = vadd.f32 %v481, %v592
        %v601 = vadd.f32 %v482, %v593
        %v602 = vadd.f32 %v483, %v594
        %v603 = vadd.f32 %v484, %v595
        %v604 = vadd.f32 %v485, %v596
        %v605 = vadd.f32 %v486, %v597
        %v606 = vadd.f32 %v487, %v598
        %v607 = vadd.f32 %v488, %v599
        %s608 = scalar_lea.vmem %s3, 32
        %v609 = vld [vmem:[%s608] sm:$0xf]
        %v610 = vld [vmem:[%s608 + $0x4] sm:$0xf]
        %v611 = vld [vmem:[%s608 + $0x8] sm:$0xf]
        %v612 = vld [vmem:[%s608 + $0xc] sm:$0xf]
        %v613 = vpack.c.bf16 %v602, %v600
        %v614 = vpack.c.bf16 %v603, %v601
        %v615 = vpack.c.bf16 %v606, %v604
        %v616 = vpack.c.bf16 %v607, %v605
        %s617 = scalar_lea.vmem %s4, 64
        %v618 = vld [vmem:[%s617] sm:$0xff]
        %v619 = vld [vmem:[%s617 + $0x8] sm:$0xff]
        %v620 = vld [vmem:[%s617 + $0x10] sm:$0xff]
        %v621 = vld [vmem:[%s617 + $0x18] sm:$0xff]
        %623 = vset.pattern.permute.xlu0 0
        %624 = vperm.xlu0 %623, %v618
        %v625 = vpop.permute.xlu0 %624
        %628 = vset.pattern.permute.xlu0 0
        %629 = vperm.xlu0 %628, %v619
        %v630 = vpop.permute.xlu0 %629
        %633 = vset.pattern.permute.xlu0 0
        %634 = vperm.xlu0 %633, %v620
        %v635 = vpop.permute.xlu0 %634
        %638 = vset.pattern.permute.xlu0 0
        %639 = vperm.xlu0 %638, %v621
        %v640 = vpop.permute.xlu0 %639
        %v646 = vunpack.c.l.b16 %v609
        %v647 = vunpack.c.l.b16 %v610
        %v648 = vunpack.c.l.b16 %v611
        %v649 = vunpack.c.l.b16 %v612
        %v650 = vpack.c.b16 %v647, %v646
        %v651 = vpack.c.b16 %v649, %v648
        %v653 = vsel %vm413, %v650, 0
        %v656 = vsel %vm413, %v651, 0
        %658 = vmatprep.subr.bf16.mxu0 %v614
        %659 = vmatpush1.bf16.msra.mxu0 %v613
        %660 = vmatprep.subr.bf16.mxu0 %v616
        %661 = vmatpush1.bf16.msra.mxu0 %v615
        %662 = vmatprep.subr.bf16.mxu0 0
        %663 = vmatpush1.bf16.msra.mxu0 0
        %664 = vmatprep.subr.bf16.mxu0 0
        %665 = vmatpush1.bf16.msra.mxu0 0
        %666 = vmatprep.subr.bf16.mxu0 0
        %667 = vmatpush1.bf16.msra.mxu0 0
        %668 = vmatprep.subr.bf16.mxu0 0
        %669 = vmatpush1.bf16.msra.mxu0 0
        %670 = vmatprep.subr.bf16.mxu0 0
        %671 = vmatpush1.bf16.msra.mxu0 0
        %672 = vmatprep.subr.bf16.mxu0 0
        %673 = vmatpush1.bf16.msra.mxu0 0
        %674 = vmatprep.subr.bf16.mxu0 0
        %675 = vmatpush1.bf16.msra.mxu0 0
        %676 = vmatprep.subr.bf16.mxu0 0
        %677 = vmatpush1.bf16.msra.mxu0 0
        %678 = vmatprep.subr.bf16.mxu0 0
        %679 = vmatpush1.bf16.msra.mxu0 0
        %680 = vmatprep.subr.bf16.mxu0 0
        %681 = vmatpush1.bf16.msra.mxu0 0
        %682 = vmatprep.subr.bf16.mxu0 0
        %683 = vmatpush1.bf16.msra.mxu0 0
        %684 = vmatprep.subr.bf16.mxu0 0
        %685 = vmatpush1.bf16.msra.mxu0 0
        %686 = vmatprep.subr.bf16.mxu0 0
        %687 = vmatpush1.bf16.msra.mxu0 0
        %688 = vmatprep.subr.bf16.mxu0 0
        %689 = vmatpush1.bf16.msra.mxu0 0
        %690 = vmatprep.mubr.bf16.mxu0 0
        %691 = vmatmul.mubr.bf16.gmra.mrb[0].mxu0 %v653
        %v692 = vpop.f32.mrb[0].mxu0
        %v693 = vadd.f32 %v625, %v692
        %v694 = vpop.f32.mrb[0].mxu0
        %v695 = vadd.f32 %v625, %v694
        %v696 = vpop.f32.mrb[0].mxu0
        %v697 = vadd.f32 %v630, %v696
        %v698 = vpop.f32.mrb[0].mxu0
        %v699 = vadd.f32 %v630, %v698
        %700 = vmatprep.mubr.bf16.mxu0 0
        %701 = vmatmul.mubr.bf16.gmra.mrb[0].mxu0 %v656
        %v702 = vpop.f32.mrb[0].mxu0
        %v703 = vadd.f32 %v635, %v702
        %v704 = vpop.f32.mrb[0].mxu0
        %v705 = vadd.f32 %v635, %v704
        %v706 = vpop.f32.mrb[0].mxu0
        %v707 = vadd.f32 %v640, %v706
        %v708 = vpop.f32.mrb[0].mxu0
        %v709 = vadd.f32 %v640, %v708
        %710 = vdwg.mxu0
        %v711 = vmax.f32 %v693, 0.0
        %v712 = vmax.f32 %v695, 0.0
        %v713 = vmax.f32 %v697, 0.0
        %v714 = vmax.f32 %v699, 0.0
        %v715 = vmax.f32 %v703, 0.0
        %v716 = vmax.f32 %v705, 0.0
        %v717 = vmax.f32 %v707, 0.0
        %v718 = vmax.f32 %v709, 0.0
        %v719 = vadd.f32 %v600, %v711
        %v720 = vadd.f32 %v601, %v712
        %v721 = vadd.f32 %v602, %v713
        %v722 = vadd.f32 %v603, %v714
        %v723 = vadd.f32 %v604, %v715
        %v724 = vadd.f32 %v605, %v716
        %v725 = vadd.f32 %v606, %v717
        %v726 = vadd.f32 %v607, %v718
        %v727 = vld [vmem:[%s5] sm:$0xf]
        %v728 = vpack.c.bf16 %v721, %v719
        %v729 = vpack.c.bf16 %v722, %v720
        %v730 = vpack.c.bf16 %v725, %v723
        %v731 = vpack.c.bf16 %v726, %v724
        %v733 = vsel %vm413, %v727, 0
        %735 = vmatprep.subr.bf16.mxu0 %v729
        %736 = vmatpush1.bf16.msra.mxu0 %v728
        %737 = vmatprep.subr.bf16.mxu0 %v731
        %738 = vmatpush1.bf16.msra.mxu0 %v730
        %739 = vmatprep.subr.bf16.mxu0 0
        %740 = vmatpush1.bf16.msra.mxu0 0
        %741 = vmatprep.subr.bf16.mxu0 0
        %742 = vmatpush1.bf16.msra.mxu0 0
        %743 = vmatprep.subr.bf16.mxu0 0
        %744 = vmatpush1.bf16.msra.mxu0 0
        %745 = vmatprep.subr.bf16.mxu0 0
        %746 = vmatpush1.bf16.msra.mxu0 0
        %747 = vmatprep.subr.bf16.mxu0 0
        %748 = vmatpush1.bf16.msra.mxu0 0
        %749 = vmatprep.subr.bf16.mxu0 0
        %750 = vmatpush1.bf16.msra.mxu0 0
        %751 = vmatprep.subr.bf16.mxu0 0
        %752 = vmatpush1.bf16.msra.mxu0 0
        %753 = vmatprep.subr.bf16.mxu0 0
        %754 = vmatpush1.bf16.msra.mxu0 0
        %755 = vmatprep.subr.bf16.mxu0 0
        %756 = vmatpush1.bf16.msra.mxu0 0
        %757 = vmatprep.subr.bf16.mxu0 0
        %758 = vmatpush1.bf16.msra.mxu0 0
        %759 = vmatprep.subr.bf16.mxu0 0
        %760 = vmatpush1.bf16.msra.mxu0 0
        %761 = vmatprep.subr.bf16.mxu0 0
        %762 = vmatpush1.bf16.msra.mxu0 0
        %763 = vmatprep.subr.bf16.mxu0 0
        %764 = vmatpush1.bf16.msra.mxu0 0
        %765 = vmatprep.subr.bf16.mxu0 0
        %766 = vmatpush1.bf16.msra.mxu0 0
        %767 = vmatprep.mubr.bf16.mxu0 0
        %768 = vmatmul.mubr.bf16.gmra.mrb[0].mxu0 %v733
        %v769 = vpop.f32.mrb[0].mxu0
        %v770 = vadd.f32 0.0, %v769
        %v771 = vpop.f32.mrb[0].mxu0
        %v772 = vadd.f32 0.0, %v771
        %v773 = vpop.f32.mrb[0].mxu0
        %v774 = vpop.f32.mrb[0].mxu0
        %775 = vdwg.mxu0
        %776 = vst [vmem:[%s245] sm:$0xff] %v770
        %777 = vst [vmem:[%s245 + $0x8] sm:$0xff] %v772
        %s778 = sand.u32 %s159, 1
        %s779 = scalar_lea.sflag [#allocation3], %s778
        %s780 = sand.u32 %s159, 1
        %s781 = smul.addr %s780, 16
        %s782 = scalar_lea.vmem [#allocation2], %s781
        // Predicated region
        $region45: #{tpu_custom_call.1} parent=43 // pred_check
          %p783 = pneg %p169
        $region46: #{tpu_custom_call.1} parent=43 // pred_check_branch
          %785 = sbr.rel (%p783) target = $region48
        $region47: #{tpu_custom_call.1} parent=43 // pred_region
          %s786 = smul.u32 2, %s20
          %s788 = ssub.s32 256, 256
          %789 = vsyncadd %s779, %s788
          %s790 = smul.addr %s786, 128
          %s791 = scalar_lea.hbm %s6, %s790
          %s793 = sshll.u32 %s782, 4
          %s794 = int_to_ptr.vmem [resolvable:$true] %s793
          %796 = dma.vmem_to_hbm [thread:$0]  %s794, 256, %s791, %s779
        $region48: #{tpu_custom_call.1} parent=43 // pred_fallthru
          _
      $region44: #{tpu_custom_call.1} parent=5 // pred_fallthru
        _
      %p797 = scmp.le.s32.totalorder 2, %s15
      // Predicated region
      $region49: #{tpu_custom_call.1} parent=5 // pred_check
        %p798 = pneg %p797
      $region50: #{tpu_custom_call.1} parent=5 // pred_check_branch
        %800 = sbr.rel (%p798) target = $region52
      $region51: #{tpu_custom_call.1} parent=5 // pred_region
        %s801 = ssub.s32 %s15, 2
        // Predicated region
        $region53: #{tpu_custom_call.1} parent=51 // pred_check
          %p802 = pneg %p175
        $region54: #{tpu_custom_call.1} parent=51 // pred_check_branch
          %804 = sbr.rel (%p802) target = $region56
        $region55: #{tpu_custom_call.1} parent=51 // pred_region
          %s805 = sand.u32 %s160, 1
          %s806 = scalar_lea.sflag [#allocation3], %s805
          %s807 = sand.u32 %s160, 1
          %s808 = smul.addr %s807, 16
          %s809 = scalar_lea.vmem [#allocation2], %s808
          %810 = dma.done %s806, 256
        $region56: #{tpu_custom_call.1} parent=51 // pred_fallthru
          _
      $region52: #{tpu_custom_call.1} parent=5 // pred_fallthru
        _
    $region6: #{tpu_custom_call.1} parent=1 // loop_footer
      %s19 = sadd.s32 1, %s15
    $region7: #{tpu_custom_call.1} parent=1 // loop_footer_branch
      %14 = sbr.rel target = $region3
    $region8: #{tpu_custom_call.1} parent=1 // loop_exit
      _
    %811 = vsyncpa [#allocation3], 1
    %s812 = scalar_lea.sflag [#allocation3], 1
    %813 = vsyncpa %s812, 1

</llo_original>
